<compile_context>
chip_gen: v5e
topology: v5e:2x2
jax: 0.10.0
libtpu: 0.0.40
codegen_flags: <defaults>
</compile_context>

<pallas_src>
import jax
import jax.numpy as jnp
from jax.experimental import pallas as pl
from jax.experimental.pallas import tpu as pltpu

IN_DIM = 256
HIDDEN_DIM = 128
APPEARANCE_DIM = 27
PADDED_OUT_DIM = 128  # lane-dense output slab (>= APPEARANCE_DIM)


def _round_up(n, m):
    return ((n + m - 1) // m) * m


def _mapper_kernel(x_ref, w1_ref, b1_ref, w2_ref, b2_ref, o_ref):
    # x_ref:  (tile_b, 256)   f32 (or bf16) VMEM  -- cast to bf16 in-kernel
    # w1_ref: (256, 128)      bf16 VMEM (grid-invariant block)
    # b1_ref: (1, 128)        f32  VMEM
    # w2_ref: (128, 128)      bf16 VMEM (zero-padded from 27 cols)
    # b2_ref: (1, 128)        f32  VMEM (zero-padded from 27 cols)
    # o_ref:  (tile_b, 128)   bf16 VMEM
    x = x_ref[...].astype(jnp.bfloat16)               # in-kernel cast (free on VPU)
    h = jnp.dot(x, w1_ref[...], preferred_element_type=jnp.float32)
    h = jnp.maximum(h + b1_ref[...], 0.0)             # ReLU 1, f32 epilogue
    h = h.astype(jnp.bfloat16)                        # bf16 LHS for 2nd matmul
    y = jnp.dot(h, w2_ref[...], preferred_element_type=jnp.float32)
    y = jnp.maximum(y + b2_ref[...], 0.0)             # ReLU 2, f32 epilogue
    o_ref[...] = y.astype(o_ref.dtype)


def appearance_mapper(x, w1, b1, w2, b2, *, tile_b=4096,
                      out_dtype=jnp.bfloat16,
                      small_batch_threshold=256,
                      force_pallas=False):
    """Fused MLP forward. x: [B, 256] -> [B, appearance_dim] (out_dtype)."""
    B, D = x.shape
    assert D == IN_DIM
    if b1.ndim == 1:
        b1 = b1[None, :]
    if b2.ndim == 1:
        b2 = b2[None, :]
    out_dim = w2.shape[1]
    assert out_dim <= PADDED_OUT_DIM

    # --- tiny batches: a single-step pallas_call is pure launch overhead ----
    if B <= small_batch_threshold and not force_pallas:
        xf = x.astype(jnp.float32)
        h = jnp.maximum(xf @ w1.astype(jnp.float32) + b1.astype(jnp.float32), 0.0)
        y = jnp.maximum(h @ w2.astype(jnp.float32) + b2.astype(jnp.float32), 0.0)
        return y.astype(out_dtype)

    # --- choose the batch tile ----------------------------------------------
    # Multiple of 16 (bf16 sublane packing); capped at round_up(cdiv(B,2),16)
    # so mid-size batches produce >= 2 near-balanced grid steps (v7x has 2 TCs).
    tile_b = max(16, min(_round_up(tile_b, 16), _round_up(pl.cdiv(B, 2), 16)))
    grid = (pl.cdiv(B, tile_b),)   # ragged last tile handled by Pallas masking

    # --- pad the second layer to a lane-dense 128-wide output ---------------
    # Zero-padded columns stay 0 after ReLU; sliced off outside the kernel.
    pad_cols = PADDED_OUT_DIM - out_dim
    w1q = w1.astype(jnp.bfloat16)                                   # tiny, one-time
    w2q = jnp.pad(w2, ((0, 0), (0, pad_cols))).astype(jnp.bfloat16)
    b1f = b1.astype(jnp.float32)
    b2f = jnp.pad(b2, ((0, 0), (0, pad_cols))).astype(jnp.float32)

    out_padded = pl.pallas_call(
        _mapper_kernel,
        out_shape=jax.ShapeDtypeStruct((B, PADDED_OUT_DIM), out_dtype),
        grid_spec=pltpu.PrefetchScalarGridSpec(
            num_scalar_prefetch=0,
            grid=grid,
            in_specs=[
                pl.BlockSpec((tile_b, IN_DIM), lambda i: (i, 0)),
                pl.BlockSpec((IN_DIM, HIDDEN_DIM), lambda i: (0, 0)),
                pl.BlockSpec((1, HIDDEN_DIM), lambda i: (0, 0)),
                pl.BlockSpec((HIDDEN_DIM, PADDED_OUT_DIM), lambda i: (0, 0)),
                pl.BlockSpec((1, PADDED_OUT_DIM), lambda i: (0, 0)),
            ],
            out_specs=pl.BlockSpec((tile_b, PADDED_OUT_DIM), lambda i: (i, 0)),
        ),
        compiler_params=pltpu.CompilerParams(
            dimension_semantics=("parallel",),
        ),
    )(x, w1q, b1f, w2q, b2f)

    # slice off lane padding outside the kernel (bf16 -> small copy);
    # downstream consumers that can take the padded (B, 128) slab should.
    return out_padded[:, :out_dim]


def _reference(x, w1, b1, w2, b2):
    h = jnp.maximum(x @ w1 + b1, 0.0)
    return jnp.maximum(h @ w2 + b2, 0.0)


if __name__ == "__main__":
    # TODO(synk): CLIP ViT-B/32 encode_image/encode_text require pretrained
    # weights from a checkpoint file; not reproducible in-script, so only the
    # AppearenceMapper MLP is implemented as the Pallas kernel.
    key = jax.random.PRNGKey(0)
    kx, k1, k2, k3, k4, kx2, kx3 = jax.random.split(key, 7)

    # Deterministic synthetic parameters (matching nn.Linear shapes,
    # stored transposed as [in, out] for the x @ W convention).
    w1 = jax.random.normal(k1, (IN_DIM, HIDDEN_DIM), dtype=jnp.float32) * 0.02
    b1 = jax.random.normal(k2, (HIDDEN_DIM,), dtype=jnp.float32) * 0.01      # 1-D like nn.Linear
    w2 = jax.random.normal(k3, (HIDDEN_DIM, APPEARANCE_DIM), dtype=jnp.float32) * 0.02
    b2 = jax.random.normal(k4, (APPEARANCE_DIM,), dtype=jnp.float32) * 0.01  # 1-D like nn.Linear

    b1_2d = b1[None, :]
    b2_2d = b2[None, :]

    # Test 1: small batch through the Pallas kernel (force_pallas to exercise
    # the kernel itself; single ragged tile of 16 with 8 valid rows).
    B = 8
    x = jax.random.normal(kx, (B, IN_DIM), dtype=jnp.float32)
    out = jax.block_until_ready(
        appearance_mapper(x, w1, b1, w2, b2, force_pallas=True))
    ref = _reference(x, w1, b1_2d, w2, b2_2d)
    assert out.shape == (B, APPEARANCE_DIM), out.shape
    assert jnp.allclose(out.astype(jnp.float32), ref, atol=1e-2, rtol=1e-2), \
        "mismatch (B=8)"

    # Test 2: non-multiple batch exercising the 2-step balanced grid and the
    # ragged last-tile writeback (no wrapper-side padding).
    B2 = 1040
    x2 = jax.random.normal(kx2, (B2, IN_DIM), dtype=jnp.float32)
    out2 = jax.block_until_ready(appearance_mapper(x2, w1, b1, w2, b2))
    ref2 = _reference(x2, w1, b1_2d, w2, b2_2d)
    assert out2.shape == (B2, APPEARANCE_DIM), out2.shape
    assert jnp.allclose(out2.astype(jnp.float32), ref2, atol=1e-2, rtol=1e-2), \
        "mismatch (B=1040)"

    # Test 3: tiny-batch XLA bypass path (no Pallas launch).
    B3 = 32
    x3 = jax.random.normal(kx3, (B3, IN_DIM), dtype=jnp.float32)
    out3 = jax.block_until_ready(appearance_mapper(x3, w1, b1, w2, b2))
    ref3 = _reference(x3, w1, b1_2d, w2, b2_2d)
    assert out3.shape == (B3, APPEARANCE_DIM), out3.shape
    assert jnp.allclose(out3.astype(jnp.float32), ref3, atol=1e-2, rtol=1e-2), \
        "mismatch (B=32, bypass)"

    print("KERNEL_OK")
</pallas_src>

<mosaic_0001>
module attributes {stable_mosaic.version = 11 : i64} {
  func.func @_mapper_kernel(%arg0: i32, %arg1: memref<16x256xf32, #tpu.memory_space<vmem>>, %arg2: memref<256x128xbf16, #tpu.memory_space<vmem>>, %arg3: memref<1x128xf32, #tpu.memory_space<vmem>>, %arg4: memref<128x128xbf16, #tpu.memory_space<vmem>>, %arg5: memref<1x128xf32, #tpu.memory_space<vmem>>, %arg6: memref<16x128xbf16, #tpu.memory_space<vmem>>) attributes {dimension_semantics = [#tpu.dimension_semantics<parallel>], iteration_bounds = array<i64: 1>, scalar_prefetch = 0 : i64, scratch_operands = 0 : i64, tpu.core_type = #tpu.core_type<tc>, window_params = [{transform_indices = @transform_0, window_bounds = array<i64: 16, 256>}, {pipeline_mode = #tpu.pipeline_mode<synchronous>, transform_indices = @transform_1, window_bounds = array<i64: 256, 128>}, {pipeline_mode = #tpu.pipeline_mode<synchronous>, transform_indices = @transform_2, window_bounds = array<i64: 1, 128>}, {pipeline_mode = #tpu.pipeline_mode<synchronous>, transform_indices = @transform_3, window_bounds = array<i64: 128, 128>}, {pipeline_mode = #tpu.pipeline_mode<synchronous>, transform_indices = @transform_4, window_bounds = array<i64: 1, 128>}, {transform_indices = @transform_5, window_bounds = array<i64: 16, 128>}]} {
    %c0 = arith.constant 0 : index
    %c0_0 = arith.constant 0 : index
    %0 = vector.load %arg1[%c0, %c0_0] : memref<16x256xf32, #tpu.memory_space<vmem>>, vector<16x256xf32>
    %1 = arith.truncf %0 : vector<16x256xf32> to vector<16x256xbf16>
    %c0_1 = arith.constant 0 : index
    %c0_2 = arith.constant 0 : index
    %2 = vector.load %arg2[%c0_1, %c0_2] : memref<256x128xbf16, #tpu.memory_space<vmem>>, vector<256x128xbf16>
    %cst = arith.constant dense<0.000000e+00> : vector<16x128xf32>
    %3 = tpu.matmul %1, %2, %cst {dimension_numbers = #tpu.dot_dimension_numbers<[1], [0], [0], [1], [0, 0, 1, 1], [], []>} : vector<16x256xbf16>, vector<256x128xbf16>, vector<16x128xf32> -> vector<16x128xf32>
    %c0_3 = arith.constant 0 : index
    %c0_4 = arith.constant 0 : index
    %4 = vector.load %arg3[%c0_3, %c0_4] : memref<1x128xf32, #tpu.memory_space<vmem>>, vector<1x128xf32>
    %5 = vector.broadcast %4 : vector<1x128xf32> to vector<16x128xf32>
    %6 = arith.addf %3, %5 : vector<16x128xf32>
    %cst_5 = arith.constant 0.000000e+00 : f32
    %7 = vector.broadcast %cst_5 : f32 to vector<16x128xf32>
    %8 = arith.maximumf %6, %7 : vector<16x128xf32>
    %9 = arith.truncf %8 : vector<16x128xf32> to vector<16x128xbf16>
    %c0_6 = arith.constant 0 : index
    %c0_7 = arith.constant 0 : index
    %10 = vector.load %arg4[%c0_6, %c0_7] : memref<128x128xbf16, #tpu.memory_space<vmem>>, vector<128x128xbf16>
    %cst_8 = arith.constant dense<0.000000e+00> : vector<16x128xf32>
    %11 = tpu.matmul %9, %10, %cst_8 {dimension_numbers = #tpu.dot_dimension_numbers<[1], [0], [0], [1], [0, 0, 1, 1], [], []>} : vector<16x128xbf16>, vector<128x128xbf16>, vector<16x128xf32> -> vector<16x128xf32>
    %c0_9 = arith.constant 0 : index
    %c0_10 = arith.constant 0 : index
    %12 = vector.load %arg5[%c0_9, %c0_10] : memref<1x128xf32, #tpu.memory_space<vmem>>, vector<1x128xf32>
    %13 = vector.broadcast %12 : vector<1x128xf32> to vector<16x128xf32>
    %14 = arith.addf %11, %13 : vector<16x128xf32>
    %cst_11 = arith.constant 0.000000e+00 : f32
    %15 = vector.broadcast %cst_11 : f32 to vector<16x128xf32>
    %16 = arith.maximumf %14, %15 : vector<16x128xf32>
    %17 = arith.truncf %16 : vector<16x128xf32> to vector<16x128xbf16>
    %c0_12 = arith.constant 0 : index
    %c0_13 = arith.constant 0 : index
    %18 = vector.load %arg6[%c0_12, %c0_13] : memref<16x128xbf16, #tpu.memory_space<vmem>>, vector<16x128xbf16>
    tpu.vector_store %arg6[%c0_12, %c0_13], %17 {strides = array<i32>} : memref<16x128xbf16, #tpu.memory_space<vmem>>, vector<16x128xbf16>,
    return
  }
  func.func @transform_0(%arg0: i32) -> (i32, i32) {
    %c0_i32 = arith.constant 0 : i32
    %c0_i32_0 = arith.constant 0 : i32
    return %arg0, %c0_i32 : i32, i32
  }
  func.func @transform_1(%arg0: i32) -> (i32, i32) {
    %c0_i32 = arith.constant 0 : i32
    %c0_i32_0 = arith.constant 0 : i32
    %c0_i32_1 = arith.constant 0 : i32
    return %c0_i32, %c0_i32_0 : i32, i32
  }
  func.func @transform_2(%arg0: i32) -> (i32, i32) {
    %c0_i32 = arith.constant 0 : i32
    %c0_i32_0 = arith.constant 0 : i32
    %c0_i32_1 = arith.constant 0 : i32
    return %c0_i32, %c0_i32_0 : i32, i32
  }
  func.func @transform_3(%arg0: i32) -> (i32, i32) {
    %c0_i32 = arith.constant 0 : i32
    %c0_i32_0 = arith.constant 0 : i32
    %c0_i32_1 = arith.constant 0 : i32
    return %c0_i32, %c0_i32_0 : i32, i32
  }
  func.func @transform_4(%arg0: i32) -> (i32, i32) {
    %c0_i32 = arith.constant 0 : i32
    %c0_i32_0 = arith.constant 0 : i32
    %c0_i32_1 = arith.constant 0 : i32
    return %c0_i32, %c0_i32_0 : i32, i32
  }
  func.func @transform_5(%arg0: i32) -> (i32, i32) {
    %c0_i32 = arith.constant 0 : i32
    %c0_i32_0 = arith.constant 0 : i32
    return %arg0, %c0_i32 : i32, i32
  }
}

</mosaic_0001>

<llo_original>
// kernel: tpu_custom_call.1
$region0: #{tpu_custom_call.1}
  #allocation0 [shape = 'u32[]', space=smem, size = 0x4, offset = 0x4, fixed_abs, tag = 'smem constant byte address 0x4 - core index']
  #allocation1 [shape = 'u32[72,128]{1,0:T(1,128)}', space=vmem, size = 0x9000, scoped, tag = 'internal scratch']
  %s0 = inlined_call_operand.hbm [shape: f32[8,256], index: 0, kind: input, shape index: {}]
  %s1 = inlined_call_operand.hbm [shape: bf16[256,128], index: 1, kind: input, shape index: {}]
  %s2 = inlined_call_operand.vmem [shape: f32[1,128], index: 2, kind: input, shape index: {}]
  %s3 = inlined_call_operand.hbm [shape: bf16[128,128], index: 3, kind: input, shape index: {}]
  %s4 = inlined_call_operand.vmem [shape: f32[1,128], index: 4, kind: input, shape index: {}]
  %s5 = inlined_call_operand.hbm [shape: bf16[8,128], index: 5, kind: output, shape index: {}]
  %s6 = sld [smem:[#allocation0]]
  $region42: #{tpu_custom_call.1} parent=0
    _
  %s8 = ssub.s32 1, %s6
  %s9 = scalar_select 0, %s8, %s6
  $region1: #{tpu_custom_call.1} parent=0
    #allocation2 [shape = 'u8[16384]{0}', space=vmem, size = 0x4000, scoped, tag = 'input window, operand 0, single buffered']
    #allocation3 [shape = 's32[1]{0}', space=sflag, size = 0x4, scoped, tag = 'scoped memory for tpu_custom_call.1']
    #allocation4 [shape = 's32[1]{0}', space=sflag, size = 0x4, scoped, tag = 'scoped memory for tpu_custom_call.1']
    #allocation5 [shape = 'u8[65536]{0}', space=vmem, size = 0x10000, scoped, tag = 'input window, operand 1, single buffered']
    #allocation6 [shape = 's32[1]{0}', space=sflag, size = 0x4, scoped, tag = 'scoped memory for tpu_custom_call.1']
    #allocation7 [shape = 'u8[32768]{0}', space=vmem, size = 0x8000, scoped, tag = 'input window, operand 3, single buffered']
    #allocation8 [shape = 'u8[4096]{0}', space=vmem, size = 0x1000, scoped, tag = 'output window, operand 0, single buffered']
    %10 = vsyncpa [#allocation3], 0
    %11 = vsyncpa [#allocation6], 0
    %12 = vsyncpa [#allocation4], 0
    // Predicated region
    $region2: #{tpu_custom_call.1} parent=1 // pred_check
      _
    $region3: #{tpu_custom_call.1} parent=1 // pred_check_branch
      %14 = sbr.rel (0) target = $region5
    $region4: #{tpu_custom_call.1} parent=1 // pred_region
      %16 = vsyncadd [#allocation3], 256
      %s17 = sshll.u32 %s0, 4
      %s18 = int_to_ptr.hbm [resolvable:$true] %s17
      %s19 = sshll.u32 [#allocation2], 4
      %s20 = int_to_ptr.vmem [resolvable:$true] %s19
      %25 = dma.hbm_to_vmem [thread:$0]  %s18, 256, %s20, [#allocation3], 256, 256, 16
    $region5: #{tpu_custom_call.1} parent=1 // pred_fallthru
      _
    // Predicated region
    $region6: #{tpu_custom_call.1} parent=1 // pred_check
      _
    $region7: #{tpu_custom_call.1} parent=1 // pred_check_branch
      %27 = sbr.rel (0) target = $region9
    $region8: #{tpu_custom_call.1} parent=1 // pred_region
      %29 = vsyncadd [#allocation6], 0
      %s30 = sshll.u32 %s1, 4
      %s31 = int_to_ptr.hbm [resolvable:$true] %s30
      %s32 = sshll.u32 [#allocation5], 4
      %s33 = int_to_ptr.vmem [resolvable:$true] %s32
      %38 = dma.hbm_to_vmem [thread:$0]  %s31, 2048, %s33, [#allocation6], 64, 64, 4
    $region9: #{tpu_custom_call.1} parent=1 // pred_fallthru
      _
    // Predicated region
    $region10: #{tpu_custom_call.1} parent=1 // pred_check
      _
    $region11: #{tpu_custom_call.1} parent=1 // pred_check_branch
      %40 = sbr.rel (0) target = $region13
    $region12: #{tpu_custom_call.1} parent=1 // pred_region
      _
    $region13: #{tpu_custom_call.1} parent=1 // pred_fallthru
      _
    // Predicated region
    $region14: #{tpu_custom_call.1} parent=1 // pred_check
      _
    $region15: #{tpu_custom_call.1} parent=1 // pred_check_branch
      %42 = sbr.rel (0) target = $region17
    $region16: #{tpu_custom_call.1} parent=1 // pred_region
      %44 = vsyncadd [#allocation6], 0
      %s45 = sshll.u32 %s3, 4
      %s46 = int_to_ptr.hbm [resolvable:$true] %s45
      %s47 = sshll.u32 [#allocation7], 4
      %s48 = int_to_ptr.vmem [resolvable:$true] %s47
      %53 = dma.hbm_to_vmem [thread:$0]  %s46, 1024, %s48, [#allocation6], 64, 64, 4
    $region17: #{tpu_custom_call.1} parent=1 // pred_fallthru
      _
    // Predicated region
    $region18: #{tpu_custom_call.1} parent=1 // pred_check
      _
    $region19: #{tpu_custom_call.1} parent=1 // pred_check_branch
      %55 = sbr.rel (0) target = $region21
    $region20: #{tpu_custom_call.1} parent=1 // pred_region
      _
    $region21: #{tpu_custom_call.1} parent=1 // pred_fallthru
      _
    // Predicated region
    $region22: #{tpu_custom_call.1} parent=1 // pred_check
      _
    $region23: #{tpu_custom_call.1} parent=1 // pred_check_branch
      %57 = sbr.rel (0) target = $region25
    $region24: #{tpu_custom_call.1} parent=1 // pred_region
      %59 = dma.done [#allocation3], 512
    $region25: #{tpu_custom_call.1} parent=1 // pred_fallthru
      _
    // Predicated region
    $region26: #{tpu_custom_call.1} parent=1 // pred_check
      _
    $region27: #{tpu_custom_call.1} parent=1 // pred_check_branch
      %61 = sbr.rel (0) target = $region29
    $region28: #{tpu_custom_call.1} parent=1 // pred_region
      %63 = dma.done [#allocation6], 2048
    $region29: #{tpu_custom_call.1} parent=1 // pred_fallthru
      _
    // Predicated region
    $region30: #{tpu_custom_call.1} parent=1 // pred_check
      _
    $region31: #{tpu_custom_call.1} parent=1 // pred_check_branch
      %65 = sbr.rel (0) target = $region33
    $region32: #{tpu_custom_call.1} parent=1 // pred_region
      %67 = dma.done [#allocation6], 1024
    $region33: #{tpu_custom_call.1} parent=1 // pred_fallthru
      _
    %v68 = vld [vmem:[#allocation2] sm:$0xff]
    %v69 = vld [vmem:[#allocation2 + $0x8] sm:$0xff]
    %v70 = vld [vmem:[#allocation2 + $0x10] sm:$0xff]
    %v71 = vld [vmem:[#allocation2 + $0x18] sm:$0xff]
    %v72 = vpack.c.bf16 %v70, %v68
    %v73 = vpack.c.bf16 %v71, %v69
    %v74 = vld [vmem:[#allocation5] sm:$0xf]
    %v75 = vld [vmem:[#allocation5 + $0x4] sm:$0xf]
    %v76 = vld [vmem:[#allocation5 + $0x8] sm:$0xf]
    %v77 = vld [vmem:[#allocation5 + $0xc] sm:$0xf]
    %v78 = vld [vmem:[#allocation5 + $0x10] sm:$0xf]
    %v79 = vld [vmem:[#allocation5 + $0x14] sm:$0xf]
    %v80 = vld [vmem:[#allocation5 + $0x18] sm:$0xf]
    %v81 = vld [vmem:[#allocation5 + $0x1c] sm:$0xf]
    %v82 = vld [vmem:[#allocation5 + $0x20] sm:$0xf]
    %v83 = vld [vmem:[#allocation5 + $0x24] sm:$0xf]
    %v84 = vld [vmem:[#allocation5 + $0x28] sm:$0xf]
    %v85 = vld [vmem:[#allocation5 + $0x2c] sm:$0xf]
    %v86 = vld [vmem:[#allocation5 + $0x30] sm:$0xf]
    %v87 = vld [vmem:[#allocation5 + $0x34] sm:$0xf]
    %v88 = vld [vmem:[#allocation5 + $0x38] sm:$0xf]
    %v89 = vld [vmem:[#allocation5 + $0x3c] sm:$0xf]
    %v90 = vld [vmem:[#allocation5 + $0x40] sm:$0xf]
    %v91 = vld [vmem:[#allocation5 + $0x44] sm:$0xf]
    %v92 = vld [vmem:[#allocation5 + $0x48] sm:$0xf]
    %v93 = vld [vmem:[#allocation5 + $0x4c] sm:$0xf]
    %v94 = vld [vmem:[#allocation5 + $0x50] sm:$0xf]
    %v95 = vld [vmem:[#allocation5 + $0x54] sm:$0xf]
    %v96 = vld [vmem:[#allocation5 + $0x58] sm:$0xf]
    %v97 = vld [vmem:[#allocation5 + $0x5c] sm:$0xf]
    %v98 = vld [vmem:[#allocation5 + $0x60] sm:$0xf]
    %v99 = vld [vmem:[#allocation5 + $0x64] sm:$0xf]
    %v100 = vld [vmem:[#allocation5 + $0x68] sm:$0xf]
    %v101 = vld [vmem:[#allocation5 + $0x6c] sm:$0xf]
    %v102 = vld [vmem:[#allocation5 + $0x70] sm:$0xf]
    %v103 = vld [vmem:[#allocation5 + $0x74] sm:$0xf]
    %v104 = vld [vmem:[#allocation5 + $0x78] sm:$0xf]
    %v105 = vld [vmem:[#allocation5 + $0x7c] sm:$0xf]
    %v106 = vld [vmem:[%s2] sm:$0x1]
    %v108 = vperm.slane %v106, 0
    %v142 = vunpack.c.l.b16 %v74
    %v143 = vunpack.c.l.b16 %v75
    %v144 = vunpack.c.l.b16 %v76
    %v145 = vunpack.c.l.b16 %v77
    %v146 = vunpack.c.l.b16 %v78
    %v147 = vunpack.c.l.b16 %v79
    %v148 = vunpack.c.l.b16 %v80
    %v149 = vunpack.c.l.b16 %v81
    %v150 = vunpack.c.l.b16 %v82
    %v151 = vunpack.c.l.b16 %v83
    %v152 = vunpack.c.l.b16 %v84
    %v153 = vunpack.c.l.b16 %v85
    %v154 = vunpack.c.l.b16 %v86
    %v155 = vunpack.c.l.b16 %v87
    %v156 = vunpack.c.l.b16 %v88
    %v157 = vunpack.c.l.b16 %v89
    %v158 = vunpack.c.l.b16 %v90
    %v159 = vunpack.c.l.b16 %v91
    %v160 = vunpack.c.l.b16 %v92
    %v161 = vunpack.c.l.b16 %v93
    %v162 = vunpack.c.l.b16 %v94
    %v163 = vunpack.c.l.b16 %v95
    %v164 = vunpack.c.l.b16 %v96
    %v165 = vunpack.c.l.b16 %v97
    %v166 = vunpack.c.l.b16 %v98
    %v167 = vunpack.c.l.b16 %v99
    %v168 = vunpack.c.l.b16 %v100
    %v169 = vunpack.c.l.b16 %v101
    %v170 = vunpack.c.l.b16 %v102
    %v171 = vunpack.c.l.b16 %v103
    %v172 = vunpack.c.l.b16 %v104
    %v173 = vunpack.c.l.b16 %v105
    %v174 = vpack.c.b16 %v143, %v142
    %v175 = vpack.c.b16 %v145, %v144
    %v176 = vpack.c.b16 %v147, %v146
    %v177 = vpack.c.b16 %v149, %v148
    %v178 = vpack.c.b16 %v151, %v150
    %v179 = vpack.c.b16 %v153, %v152
    %v180 = vpack.c.b16 %v155, %v154
    %v181 = vpack.c.b16 %v157, %v156
    %v182 = vpack.c.b16 %v159, %v158
    %v183 = vpack.c.b16 %v161, %v160
    %v184 = vpack.c.b16 %v163, %v162
    %v185 = vpack.c.b16 %v165, %v164
    %v186 = vpack.c.b16 %v167, %v166
    %v187 = vpack.c.b16 %v169, %v168
    %v188 = vpack.c.b16 %v171, %v170
    %v189 = vpack.c.b16 %v173, %v172
    %206 = vmatpush.bf16.msra.mxu0 %v181
    %207 = vmatpush.bf16.msra.mxu0 %v180
    %208 = vmatpush.bf16.msra.mxu0 %v179
    %209 = vmatpush.bf16.msra.mxu0 %v178
    %210 = vmatpush.bf16.msra.mxu0 %v177
    %211 = vmatpush.bf16.msra.mxu0 %v176
    %212 = vmatpush.bf16.msra.mxu0 %v175
    %213 = vmatpush.bf16.msra.mxu0 %v174
    %214 = vmatmul.bf16.gmra.mxu0 %v72
    %v215 = vpop.f32.mrf.mxu0
    %v216 = vadd.f32 %v108, %v215
    %v217 = vpop.f32.mrf.mxu0
    %v218 = vadd.f32 %v108, %v217
    %219 = vdwg.mxu0
    %220 = vmatpush.bf16.msra.mxu0 %v189
    %221 = vmatpush.bf16.msra.mxu0 %v188
    %222 = vmatpush.bf16.msra.mxu0 %v187
    %223 = vmatpush.bf16.msra.mxu0 %v186
    %224 = vmatpush.bf16.msra.mxu0 %v185
    %225 = vmatpush.bf16.msra.mxu0 %v184
    %226 = vmatpush.bf16.msra.mxu0 %v183
    %227 = vmatpush.bf16.msra.mxu0 %v182
    %228 = vmatmul.bf16.gmra.mxu0 %v73
    %v229 = vpop.f32.mrf.mxu0
    %v230 = vadd.f32 %v216, %v229
    %v231 = vpop.f32.mrf.mxu0
    %v232 = vadd.f32 %v218, %v231
    %233 = vdwg.mxu0
    %v234 = vmax.f32 %v230, 0.0
    %v235 = vmax.f32 %v232, 0.0
    %v236 = vpack.c.bf16 %v235, %v234
    %v237 = vld [vmem:[#allocation7] sm:$0xf]
    %v238 = vld [vmem:[#allocation7 + $0x4] sm:$0xf]
    %v239 = vld [vmem:[#allocation7 + $0x8] sm:$0xf]
    %v240 = vld [vmem:[#allocation7 + $0xc] sm:$0xf]
    %v241 = vld [vmem:[#allocation7 + $0x10] sm:$0xf]
    %v242 = vld [vmem:[#allocation7 + $0x14] sm:$0xf]
    %v243 = vld [vmem:[#allocation7 + $0x18] sm:$0xf]
    %v244 = vld [vmem:[#allocation7 + $0x1c] sm:$0xf]
    %v245 = vld [vmem:[#allocation7 + $0x20] sm:$0xf]
    %v246 = vld [vmem:[#allocation7 + $0x24] sm:$0xf]
    %v247 = vld [vmem:[#allocation7 + $0x28] sm:$0xf]
    %v248 = vld [vmem:[#allocation7 + $0x2c] sm:$0xf]
    %v249 = vld [vmem:[#allocation7 + $0x30] sm:$0xf]
    %v250 = vld [vmem:[#allocation7 + $0x34] sm:$0xf]
    %v251 = vld [vmem:[#allocation7 + $0x38] sm:$0xf]
    %v252 = vld [vmem:[#allocation7 + $0x3c] sm:$0xf]
    %v253 = vld [vmem:[%s4] sm:$0x1]
    %v255 = vperm.slane %v253, 0
    %v273 = vunpack.c.l.b16 %v237
    %v274 = vunpack.c.l.b16 %v238
    %v275 = vunpack.c.l.b16 %v239
    %v276 = vunpack.c.l.b16 %v240
    %v277 = vunpack.c.l.b16 %v241
    %v278 = vunpack.c.l.b16 %v242
    %v279 = vunpack.c.l.b16 %v243
    %v280 = vunpack.c.l.b16 %v244
    %v281 = vunpack.c.l.b16 %v245
    %v282 = vunpack.c.l.b16 %v246
    %v283 = vunpack.c.l.b16 %v247
    %v284 = vunpack.c.l.b16 %v248
    %v285 = vunpack.c.l.b16 %v249
    %v286 = vunpack.c.l.b16 %v250
    %v287 = vunpack.c.l.b16 %v251
    %v288 = vunpack.c.l.b16 %v252
    %v289 = vpack.c.b16 %v274, %v273
    %v290 = vpack.c.b16 %v276, %v275
    %v291 = vpack.c.b16 %v278, %v277
    %v292 = vpack.c.b16 %v280, %v279
    %v293 = vpack.c.b16 %v282, %v281
    %v294 = vpack.c.b16 %v284, %v283
    %v295 = vpack.c.b16 %v286, %v285
    %v296 = vpack.c.b16 %v288, %v287
    %305 = vmatpush.bf16.msra.mxu0 %v296
    %306 = vmatpush.bf16.msra.mxu0 %v295
    %307 = vmatpush.bf16.msra.mxu0 %v294
    %308 = vmatpush.bf16.msra.mxu0 %v293
    %309 = vmatpush.bf16.msra.mxu0 %v292
    %310 = vmatpush.bf16.msra.mxu0 %v291
    %311 = vmatpush.bf16.msra.mxu0 %v290
    %312 = vmatpush.bf16.msra.mxu0 %v289
    %313 = vmatmul.bf16.gmra.mxu0 %v236
    %v314 = vpop.f32.mrf.mxu0
    %v315 = vadd.f32 %v255, %v314
    %v316 = vpop.f32.mrf.mxu0
    %v317 = vadd.f32 %v255, %v316
    %318 = vdwg.mxu0
    %v319 = vmax.f32 %v315, 0.0
    %v320 = vmax.f32 %v317, 0.0
    %v321 = vpack.c.bf16 %v319, %v319
    %v322 = vpack.c.bf16 %v320, %v320
    %323 = vst [vmem:[#allocation8] sm:$0xf] %v321
    %324 = vst [vmem:[#allocation8 + $0x4] sm:$0xf] %v322
    // Predicated region
    $region34: #{tpu_custom_call.1} parent=1 // pred_check
      _
    $region35: #{tpu_custom_call.1} parent=1 // pred_check_branch
      %326 = sbr.rel (0) target = $region37
    $region36: #{tpu_custom_call.1} parent=1 // pred_region
      %328 = vsyncadd [#allocation4], 64
      %s329 = sshll.u32 [#allocation8], 4
      %s330 = int_to_ptr.vmem [resolvable:$true] %s329
      %s331 = sshll.u32 %s5, 4
      %s332 = int_to_ptr.hbm [resolvable:$true] %s331
      %337 = dma.vmem_to_hbm [thread:$0]  %s330, 64, %s332, [#allocation4], 64, 64, 4
    $region37: #{tpu_custom_call.1} parent=1 // pred_fallthru
      _
    // Predicated region
    $region38: #{tpu_custom_call.1} parent=1 // pred_check
      _
    $region39: #{tpu_custom_call.1} parent=1 // pred_check_branch
      %339 = sbr.rel (0) target = $region41
    $region40: #{tpu_custom_call.1} parent=1 // pred_region
      %341 = dma.done [#allocation4], 128
    $region41: #{tpu_custom_call.1} parent=1 // pred_fallthru
      _
    %342 = vsyncpa [#allocation3], 1
    %343 = vsyncpa [#allocation6], 1
    %344 = vsyncpa [#allocation4], 1

</llo_original>
